<compile_context>
chip_gen: v5e
topology: v5e:2x2
jax: 0.10.0
libtpu: 0.0.40
codegen_flags: <defaults>
</compile_context>

<pallas_src>
import jax
import jax.numpy as jnp
import numpy as np
from jax import lax
from jax.experimental import pallas as pl
from jax.experimental.pallas import tpu as pltpu


# ---------------------------------------------------------------------------
# Fused kernel (one (batch_tile, vocab_tile) grid step):
#   logits[b,s,v] = hidden[b,s,:] @ W[:,v]                  (bf16 MXU, f32 acc)
#   splade[b,v]   = log1p(relu(max_s(logits + madd) + bias[v]))
#   mean[b,h]     = sum_s(hidden*mask) / clamp(sum_s(mask), 1e-9)   (at v-tile 0)
# ---------------------------------------------------------------------------
def _make_joint_kernel(tb, s_pad, h_dim, tv, sc):
    n_chunks = s_pad // sc

    def _start(c):
        s0 = c * sc
        return s0 if isinstance(c, int) else pl.multiple_of(s0, sc)

    def _chunk_loop(body, init):
        # Few chunks: static unroll (LLO visibility); many chunks: fori_loop.
        if n_chunks <= 4:
            carry = init
            for c in range(n_chunks):
                carry = body(c, carry)
            return carry
        return lax.fori_loop(0, n_chunks, body, init)

    def kernel(h_ref, madd_ref, mask_ref, w_ref, b_ref, splade_ref, mean_ref):
        # h_ref:      (TB, S, H)   bf16   hidden states (resident across v axis)
        # madd_ref:   (TB, S, 1)   f32    additive mask: 0 valid / -1e30 padded
        # mask_ref:   (TB, S, 1)   f32    0/1 attention mask (for mean pooling)
        # w_ref:      (1, H, TV)   bf16   contiguous vocab tile of MLM-head weight
        # b_ref:      (1, TV)      f32
        # splade_ref: (TB, TV)     f32
        # mean_ref:   (TB, H)      f32
        w = w_ref[0]                                          # (H, TV) bf16

        def max_body(c, mx):
            s0 = _start(c)
            hc = h_ref[:, pl.ds(s0, sc), :]                   # (TB, SC, H) bf16
            logits = jnp.dot(hc.reshape(tb * sc, h_dim), w,
                             preferred_element_type=jnp.float32)
            logits = logits.reshape(tb, sc, tv)               # (TB, SC, TV) f32
            masked = logits + madd_ref[:, pl.ds(s0, sc), :]   # additive mask
            return jnp.maximum(mx, jnp.max(masked, axis=1))   # running max

        mx = _chunk_loop(max_body,
                         jnp.full((tb, tv), -jnp.inf, dtype=jnp.float32))

        # bias / relu / log1p hoisted past the masked max (monotone, >=0; fully
        # masked rows sit at ~-1e30 and map to 0, matching the reference).
        splade_ref[...] = jnp.log1p(
            jnp.maximum(mx + b_ref[...], 0.0)).astype(splade_ref.dtype)

        # Mean pooling: hidden tile is already resident; compute once per batch
        # tile.  Requires the v grid axis to stay "arbitrary".
        @pl.when(pl.program_id(1) == 0)
        def _():
            def mean_body(c, carry):
                summed, counts = carry
                s0 = _start(c)
                hc = h_ref[:, pl.ds(s0, sc), :].astype(jnp.float32)
                mc = mask_ref[:, pl.ds(s0, sc), :]
                return (summed + jnp.sum(hc * mc, axis=1),
                        counts + jnp.sum(mc, axis=1))

            summed, counts = _chunk_loop(
                mean_body, (jnp.zeros((tb, h_dim), jnp.float32),
                            jnp.zeros((tb, 1), jnp.float32)))
            mean_ref[...] = (summed / jnp.maximum(counts, 1e-9)
                             ).astype(mean_ref.dtype)

    return kernel


def _round_up(x, m):
    return ((x + m - 1) // m) * m


def _device_vmem_bytes():
    try:
        return int(pltpu.get_tpu_info().vmem_capacity_bytes)
    except Exception:
        return 128 * 1024 * 1024


def _device_num_cores():
    try:
        return max(1, int(getattr(jax.devices()[0], "num_cores", 1) or 1))
    except Exception:
        return 1


def joint_dense_sparse_forward(last_hidden_states, attention_mask, w_mlm, b_mlm,
                               *, vocab_tile=512, batch_tile=16, seq_chunk=128,
                               vmem_limit_bytes=None):
    """Returns (sentence_embedding [B, V], mean_dense_embedding [B, H])."""
    B, S, H = last_hidden_states.shape
    Hw, V = w_mlm.shape
    assert Hw == H
    assert batch_tile % 8 == 0 and vocab_tile % 128 == 0 and seq_chunk % 8 == 0

    # ---- tile sizes (re-derived per device generation) ----------------------
    vmem_cap = _device_vmem_bytes()
    if vmem_limit_bytes is None:
        # ~96 MiB on 128 MiB parts (v5e/v6e), ~48 MiB on 64 MiB parts (v7x).
        vmem_limit_bytes = min(96 * 1024 * 1024, (vmem_cap * 3) // 4)

    tb = min(batch_tile, _round_up(B, 8))          # multiple of 8: dense stores
    ncores = _device_num_cores()
    if ncores >= 2 and B > 8 and pl.cdiv(B, tb) < ncores:
        # Megacore (v7x): make sure the only "parallel" grid axis has >= ncores
        # tiles so no TensorCore sits idle.  No-op on single-TC chips.
        tb = max(8, _round_up(pl.cdiv(B, ncores), 8))
    b_pad = _round_up(B, tb)
    nb = b_pad // tb

    tv = min(vocab_tile, _round_up(V, 128))
    v_pad = _round_up(V, tv)
    nv = v_pad // tv

    sc = min(seq_chunk, _round_up(S, 8))           # S-chunk for the running max
    s_pad = _round_up(S, sc)

    # ---- operands (casts / masks / layout hoisted out of the kernel) --------
    hidden = last_hidden_states.astype(jnp.bfloat16)          # bf16 MXU operand
    mask = attention_mask.astype(jnp.float32)
    if b_pad != B or s_pad != S:
        hidden = jnp.pad(hidden, ((0, b_pad - B), (0, s_pad - S), (0, 0)))
        mask = jnp.pad(mask, ((0, b_pad - B), (0, s_pad - S)))
    mask3 = mask.reshape(b_pad, s_pad, 1)
    madd3 = jnp.where(mask3 > 0.0, 0.0, -1e30).astype(jnp.float32)

    w = w_mlm.astype(jnp.bfloat16)                 # halve dominant W HBM stream
    bias = b_mlm.astype(jnp.float32).reshape(1, V)
    if v_pad != V:
        w = jnp.pad(w, ((0, 0), (0, v_pad - V)))
        bias = jnp.pad(bias, ((0, 0), (0, v_pad - V)))
    # Contiguous (H, tv) vocab tiles -> each W tile DMA is one dense block.
    w_tiled = w.reshape(H, nv, tv).transpose(1, 0, 2)          # (nv, H, tv)

    kernel = _make_joint_kernel(tb, s_pad, H, tv, sc)

    flops = 2 * b_pad * s_pad * H * v_pad
    bytes_accessed = (nb * H * v_pad * 2                 # W re-read per batch tile
                      + b_pad * s_pad * (H * 2 + 8)      # hidden bf16 + 2 masks
                      + b_pad * v_pad * 4 + b_pad * H * 4)

    splade_pad, mean_pad = pl.pallas_call(
        kernel,
        out_shape=(jax.ShapeDtypeStruct((b_pad, v_pad), jnp.float32),
                   jax.ShapeDtypeStruct((b_pad, H), jnp.float32)),
        grid_spec=pltpu.PrefetchScalarGridSpec(
            num_scalar_prefetch=0,
            grid=(nb, nv),
            in_specs=[
                pl.BlockSpec((tb, s_pad, H), lambda b, v: (b, 0, 0)),  # resident over v
                pl.BlockSpec((tb, s_pad, 1), lambda b, v: (b, 0, 0)),
                pl.BlockSpec((tb, s_pad, 1), lambda b, v: (b, 0, 0)),
                pl.BlockSpec((1, H, tv), lambda b, v: (v, 0, 0)),
                pl.BlockSpec((1, tv), lambda b, v: (0, v)),
            ],
            out_specs=[
                pl.BlockSpec((tb, tv), lambda b, v: (b, v)),     # lane/sublane-dense
                pl.BlockSpec((tb, H), lambda b, v: (b, 0)),      # revisited over v
            ],
        ),
        compiler_params=pltpu.CompilerParams(
            dimension_semantics=("parallel", "arbitrary"),
            vmem_limit_bytes=int(vmem_limit_bytes)),
        cost_estimate=pl.CostEstimate(flops=flops,
                                      transcendentals=b_pad * v_pad,
                                      bytes_accessed=bytes_accessed),
    )(hidden, madd3, mask3, w_tiled, bias)

    sentence_embedding = splade_pad[:B, :V]
    mean_dense_embedding = mean_pad[:B, :H]
    return sentence_embedding, mean_dense_embedding


def reference_forward(last_hidden_states, attention_mask, w_mlm, b_mlm):
    mask = attention_mask.astype(jnp.float32)[..., None]             # (B, S, 1)
    logits = jnp.einsum("bsh,hv->bsv", last_hidden_states, w_mlm) + b_mlm
    splade = jnp.max(jnp.log1p(jnp.maximum(logits, 0.0)) * mask, axis=1)
    seq_lens = jnp.maximum(jnp.sum(mask, axis=1), 1e-9)
    mean = jnp.sum(last_hidden_states * mask, axis=1) / seq_lens
    return splade, mean


if __name__ == "__main__":
    # Small deterministic synthetic setup consistent with the module's forward:
    #   B=2 sentences, S=8 tokens, H=32 hidden dim, V=256 "vocab" (sparse dim).
    B, S, H, V = 2, 8, 32, 256
    key = jax.random.PRNGKey(0)
    k_emb, k_ids, k_w, k_b = jax.random.split(key, 4)

    # Deterministic stand-in for the transformer encoder output.  Values are made
    # bf16-representable so the bf16-MXU kernel matches the f32 reference tightly.
    vocab_table = (jax.random.normal(k_emb, (V, H), dtype=jnp.float32) * 0.5
                   ).astype(jnp.bfloat16).astype(jnp.float32)
    input_ids = jax.random.randint(k_ids, (B, S), 0, V)
    last_hidden_states = vocab_table[input_ids]                      # (B, S, H)

    # Deterministic MLM-head parameters (produce token_embeddings / logits).
    w_mlm = (jax.random.normal(k_w, (H, V), dtype=jnp.float32) * 0.1
             ).astype(jnp.bfloat16).astype(jnp.float32)
    b_mlm = jax.random.normal(k_b, (V,), dtype=jnp.float32) * 0.1

    # Attention mask with some padding.
    lengths = jnp.array([S, 5], dtype=jnp.int32)
    attention_mask = (jnp.arange(S)[None, :] < lengths[:, None]).astype(jnp.float32)

    splade_emb, mean_emb = joint_dense_sparse_forward(
        last_hidden_states, attention_mask, w_mlm, b_mlm)
    jax.block_until_ready((splade_emb, mean_emb))

    ref_splade, ref_mean = reference_forward(
        last_hidden_states, attention_mask, w_mlm, b_mlm)

    assert splade_emb.shape == (B, V) and mean_emb.shape == (B, H)
    np.testing.assert_allclose(np.asarray(splade_emb), np.asarray(ref_splade),
                               rtol=1e-3, atol=1e-3)
    np.testing.assert_allclose(np.asarray(mean_emb), np.asarray(ref_mean),
                               rtol=1e-3, atol=1e-3)

    print("KERNEL_OK")
</pallas_src>

<mosaic_0001>
module attributes {stable_mosaic.version = 11 : i64} {
  func.func @kernel(%arg0: i32, %arg1: i32, %arg2: memref<8x8x32xbf16, #tpu.memory_space<vmem>>, %arg3: memref<8x8x1xf32, #tpu.memory_space<vmem>>, %arg4: memref<8x8x1xf32, #tpu.memory_space<vmem>>, %arg5: memref<1x32x256xbf16, #tpu.memory_space<vmem>>, %arg6: memref<1x256xf32, #tpu.memory_space<vmem>>, %arg7: memref<8x256xf32, #tpu.memory_space<vmem>>, %arg8: memref<8x32xf32, #tpu.memory_space<vmem>>) attributes {dimension_semantics = [#tpu.dimension_semantics<parallel>, #tpu.dimension_semantics<arbitrary>], iteration_bounds = array<i64: 1, 1>, scalar_prefetch = 0 : i64, scratch_operands = 0 : i64, tpu.core_type = #tpu.core_type<tc>, window_params = [{transform_indices = @transform_0, window_bounds = array<i64: 8, 8, 32>}, {transform_indices = @transform_1, window_bounds = array<i64: 8, 8, 1>}, {transform_indices = @transform_2, window_bounds = array<i64: 8, 8, 1>}, {transform_indices = @transform_3, window_bounds = array<i64: 1, 32, 256>}, {transform_indices = @transform_4, window_bounds = array<i64: 1, 256>}, {transform_indices = @transform_5, window_bounds = array<i64: 8, 256>}, {transform_indices = @transform_6, window_bounds = array<i64: 8, 32>}]} {
    %c0 = arith.constant 0 : index
    %c0_0 = arith.constant 0 : index
    %c0_1 = arith.constant 0 : index
    %0 = vector.load %arg5[%c0, %c0_0, %c0_1] : memref<1x32x256xbf16, #tpu.memory_space<vmem>>, vector<1x32x256xbf16>
    %1 = vector.shape_cast %0 : vector<1x32x256xbf16> to vector<32x256xbf16>
    %cst = arith.constant 0xFF800000 : f32
    %2 = vector.broadcast %cst : f32 to vector<8x256xf32>
    %c0_2 = arith.constant 0 : index
    %c0_3 = arith.constant 0 : index
    %c0_4 = arith.constant 0 : index
    %3 = vector.load %arg2[%c0_2, %c0_3, %c0_4] : memref<8x8x32xbf16, #tpu.memory_space<vmem>>, vector<8x8x32xbf16>
    %4 = vector.shape_cast %3 : vector<8x8x32xbf16> to vector<64x32xbf16>
    %cst_5 = arith.constant dense<0.000000e+00> : vector<64x256xf32>
    %5 = tpu.matmul %4, %1, %cst_5 {dimension_numbers = #tpu.dot_dimension_numbers<[1], [0], [0], [1], [0, 0, 1, 1], [], []>} : vector<64x32xbf16>, vector<32x256xbf16>, vector<64x256xf32> -> vector<64x256xf32>
    %6 = vector.shape_cast %5 : vector<64x256xf32> to vector<8x8x256xf32>
    %c0_6 = arith.constant 0 : index
    %c0_7 = arith.constant 0 : index
    %c0_8 = arith.constant 0 : index
    %7 = vector.load %arg3[%c0_6, %c0_7, %c0_8] : memref<8x8x1xf32, #tpu.memory_space<vmem>>, vector<8x8x1xf32>
    %8 = vector.broadcast %7 : vector<8x8x1xf32> to vector<8x8x256xf32>
    %9 = arith.addf %6, %8 : vector<8x8x256xf32>
    %cst_9 = arith.constant dense<0xFF800000> : vector<8x256xf32>
    %10 = vector.multi_reduction <maximumf>, %9, %cst_9 [1] : vector<8x8x256xf32> to vector<8x256xf32>
    %11 = arith.maximumf %2, %10 : vector<8x256xf32>
    %c0_10 = arith.constant 0 : index
    %c0_11 = arith.constant 0 : index
    %12 = vector.load %arg6[%c0_10, %c0_11] : memref<1x256xf32, #tpu.memory_space<vmem>>, vector<1x256xf32>
    %13 = vector.broadcast %12 : vector<1x256xf32> to vector<8x256xf32>
    %14 = arith.addf %11, %13 : vector<8x256xf32>
    %cst_12 = arith.constant 0.000000e+00 : f32
    %15 = vector.broadcast %cst_12 : f32 to vector<8x256xf32>
    %16 = arith.maximumf %14, %15 : vector<8x256xf32>
    %17 = math.log1p %16 : vector<8x256xf32>
    %c0_13 = arith.constant 0 : index
    %c0_14 = arith.constant 0 : index
    %18 = vector.load %arg7[%c0_13, %c0_14] : memref<8x256xf32, #tpu.memory_space<vmem>>, vector<8x256xf32>
    tpu.vector_store %arg7[%c0_13, %c0_14], %17 {strides = array<i32>} : memref<8x256xf32, #tpu.memory_space<vmem>>, vector<8x256xf32>,
    %c0_i32 = arith.constant 0 : i32
    %19 = arith.cmpi eq, %arg1, %c0_i32 : i32
    %20 = arith.extui %19 : i1 to i32
    %c0_i32_15 = arith.constant 0 : i32
    %21 = arith.cmpi ne, %20, %c0_i32_15 : i32
    scf.if %21 {
      %cst_16 = arith.constant 0.000000e+00 : f32
      %22 = vector.broadcast %cst_16 : f32 to vector<8x32xf32>
      %cst_17 = arith.constant 0.000000e+00 : f32
      %23 = vector.broadcast %cst_17 : f32 to vector<8x1xf32>
      %c0_18 = arith.constant 0 : index
      %c0_19 = arith.constant 0 : index
      %c0_20 = arith.constant 0 : index
      %24 = vector.load %arg2[%c0_18, %c0_19, %c0_20] : memref<8x8x32xbf16, #tpu.memory_space<vmem>>, vector<8x8x32xbf16>
      %25 = arith.extf %24 : vector<8x8x32xbf16> to vector<8x8x32xf32>
      %c0_21 = arith.constant 0 : index
      %c0_22 = arith.constant 0 : index
      %c0_23 = arith.constant 0 : index
      %26 = vector.load %arg4[%c0_21, %c0_22, %c0_23] : memref<8x8x1xf32, #tpu.memory_space<vmem>>, vector<8x8x1xf32>
      %27 = vector.broadcast %26 : vector<8x8x1xf32> to vector<8x8x32xf32>
      %28 = arith.mulf %25, %27 : vector<8x8x32xf32>
      %cst_24 = arith.constant dense<0.000000e+00> : vector<8x32xf32>
      %29 = vector.multi_reduction <add>, %28, %cst_24 [1] : vector<8x8x32xf32> to vector<8x32xf32>
      %30 = arith.addf %22, %29 : vector<8x32xf32>
      %cst_25 = arith.constant dense<0.000000e+00> : vector<8x1xf32>
      %31 = vector.multi_reduction <add>, %26, %cst_25 [1] : vector<8x8x1xf32> to vector<8x1xf32>
      %32 = arith.addf %23, %31 : vector<8x1xf32>
      %cst_26 = arith.constant 9.99999971E-10 : f32
      %33 = vector.broadcast %cst_26 : f32 to vector<8x1xf32>
      %34 = arith.maximumf %32, %33 : vector<8x1xf32>
      %35 = vector.broadcast %34 : vector<8x1xf32> to vector<8x32xf32>
      %36 = arith.divf %30, %35 : vector<8x32xf32>
      %c0_27 = arith.constant 0 : index
      %c0_28 = arith.constant 0 : index
      %37 = vector.load %arg8[%c0_27, %c0_28] : memref<8x32xf32, #tpu.memory_space<vmem>>, vector<8x32xf32>
      tpu.vector_store %arg8[%c0_27, %c0_28], %36 {strides = array<i32>} : memref<8x32xf32, #tpu.memory_space<vmem>>, vector<8x32xf32>,
    } else {
    }
    return
  }
  func.func @transform_0(%arg0: i32, %arg1: i32) -> (i32, i32, i32) {
    %c0_i32 = arith.constant 0 : i32
    %c0_i32_0 = arith.constant 0 : i32
    %c0_i32_1 = arith.constant 0 : i32
    return %arg0, %c0_i32, %c0_i32_0 : i32, i32, i32
  }
  func.func @transform_1(%arg0: i32, %arg1: i32) -> (i32, i32, i32) {
    %c0_i32 = arith.constant 0 : i32
    %c0_i32_0 = arith.constant 0 : i32
    %c0_i32_1 = arith.constant 0 : i32
    return %arg0, %c0_i32, %c0_i32_0 : i32, i32, i32
  }
  func.func @transform_2(%arg0: i32, %arg1: i32) -> (i32, i32, i32) {
    %c0_i32 = arith.constant 0 : i32
    %c0_i32_0 = arith.constant 0 : i32
    %c0_i32_1 = arith.constant 0 : i32
    return %arg0, %c0_i32, %c0_i32_0 : i32, i32, i32
  }
  func.func @transform_3(%arg0: i32, %arg1: i32) -> (i32, i32, i32) {
    %c0_i32 = arith.constant 0 : i32
    %c0_i32_0 = arith.constant 0 : i32
    %c0_i32_1 = arith.constant 0 : i32
    return %arg1, %c0_i32, %c0_i32_0 : i32, i32, i32
  }
  func.func @transform_4(%arg0: i32, %arg1: i32) -> (i32, i32) {
    %c0_i32 = arith.constant 0 : i32
    %c0_i32_0 = arith.constant 0 : i32
    return %c0_i32, %arg1 : i32, i32
  }
  func.func @transform_5(%arg0: i32, %arg1: i32) -> (i32, i32) {
    %c0_i32 = arith.constant 0 : i32
    return %arg0, %arg1 : i32, i32
  }
  func.func @transform_6(%arg0: i32, %arg1: i32) -> (i32, i32) {
    %c0_i32 = arith.constant 0 : i32
    %c0_i32_0 = arith.constant 0 : i32
    return %arg0, %c0_i32 : i32, i32
  }
}

</mosaic_0001>

<llo_original>
// kernel: tpu_custom_call.1
$region0: #{tpu_custom_call.1}
  #allocation0 [shape = 'u32[]', space=smem, size = 0x4, offset = 0x4, fixed_abs, tag = 'smem constant byte address 0x4 - core index']
  #allocation1 [shape = 'u32[72,128]{1,0:T(1,128)}', space=vmem, size = 0x9000, scoped, tag = 'internal scratch']
  %s0 = inlined_call_operand.vmem [shape: bf16[8,8,32], index: 0, kind: input, shape index: {}]
  %s1 = inlined_call_operand.vmem [shape: f32[8,8,1], index: 1, kind: input, shape index: {}]
  %s2 = inlined_call_operand.vmem [shape: f32[8,8,1], index: 2, kind: input, shape index: {}]
  %s3 = inlined_call_operand.vmem [shape: bf16[1,32,256], index: 3, kind: input, shape index: {}]
  %s4 = inlined_call_operand.vmem [shape: f32[1,256], index: 4, kind: input, shape index: {}]
  %s5 = inlined_call_operand.hbm [shape: f32[8,256], index: 5, kind: output, shape index: {0}]
  %s6 = inlined_call_operand.hbm [shape: f32[8,32], index: 6, kind: output, shape index: {1}]
  %7 = xla_tuple %s5, %s6
  %s8 = sld [smem:[#allocation0]]
  $region42: #{tpu_custom_call.1} parent=0
    _
  %s10 = ssub.s32 1, %s8
  %s11 = scalar_select 0, %s10, %s8
  $region1: #{tpu_custom_call.1} parent=0
    #allocation2 [shape = 'u8[8192]{0}', space=vmem, size = 0x2000, scoped, tag = 'output window, operand 0, single buffered']
    #allocation3 [shape = 's32[1]{0}', space=sflag, size = 0x4, scoped, tag = 'scoped memory for tpu_custom_call.1']
    #allocation4 [shape = 'u8[4096]{0}', space=vmem, size = 0x1000, scoped, tag = 'output window, operand 1, single buffered']
    #allocation5 [shape = 's32[1]{0}', space=sflag, size = 0x4, scoped, tag = 'scoped memory for tpu_custom_call.1']
    %12 = vsyncpa [#allocation3], 0
    %13 = vsyncpa [#allocation5], 0
    // Predicated region
    $region2: #{tpu_custom_call.1} parent=1 // pred_check
      _
    $region3: #{tpu_custom_call.1} parent=1 // pred_check_branch
      %15 = sbr.rel (0) target = $region5
    $region4: #{tpu_custom_call.1} parent=1 // pred_region
      _
    $region5: #{tpu_custom_call.1} parent=1 // pred_fallthru
      _
    // Predicated region
    $region6: #{tpu_custom_call.1} parent=1 // pred_check
      _
    $region7: #{tpu_custom_call.1} parent=1 // pred_check_branch
      %17 = sbr.rel (0) target = $region9
    $region8: #{tpu_custom_call.1} parent=1 // pred_region
      _
    $region9: #{tpu_custom_call.1} parent=1 // pred_fallthru
      _
    // Predicated region
    $region10: #{tpu_custom_call.1} parent=1 // pred_check
      _
    $region11: #{tpu_custom_call.1} parent=1 // pred_check_branch
      %19 = sbr.rel (0) target = $region13
    $region12: #{tpu_custom_call.1} parent=1 // pred_region
      _
    $region13: #{tpu_custom_call.1} parent=1 // pred_fallthru
      _
    // Predicated region
    $region14: #{tpu_custom_call.1} parent=1 // pred_check
      _
    $region15: #{tpu_custom_call.1} parent=1 // pred_check_branch
      %21 = sbr.rel (0) target = $region17
    $region16: #{tpu_custom_call.1} parent=1 // pred_region
      _
    $region17: #{tpu_custom_call.1} parent=1 // pred_fallthru
      _
    // Predicated region
    $region18: #{tpu_custom_call.1} parent=1 // pred_check
      _
    $region19: #{tpu_custom_call.1} parent=1 // pred_check_branch
      %23 = sbr.rel (0) target = $region21
    $region20: #{tpu_custom_call.1} parent=1 // pred_region
      _
    $region21: #{tpu_custom_call.1} parent=1 // pred_fallthru
      _
    %v25 = vld [vmem:[%s3] sm:$0xff]
    %v26 = vld [vmem:[%s3 + $0x8] sm:$0xff]
    %v27 = vld [vmem:[%s3 + $0x10] sm:$0xff]
    %v28 = vld [vmem:[%s3 + $0x18] sm:$0xff]
    %v29 = vld [vmem:[%s0] sm:$0xf]
    %v30 = vld [vmem:[%s0 + $0x4] sm:$0xf]
    %v31 = vld [vmem:[%s0 + $0x8] sm:$0xf]
    %v32 = vld [vmem:[%s0 + $0xc] sm:$0xf]
    %v33 = vld [vmem:[%s0 + $0x10] sm:$0xf]
    %v34 = vld [vmem:[%s0 + $0x14] sm:$0xf]
    %v35 = vld [vmem:[%s0 + $0x18] sm:$0xf]
    %v36 = vld [vmem:[%s0 + $0x1c] sm:$0xf]
    %v45 = vunpack.c.l.b16 %v29
    %v46 = vunpack.c.l.b16 %v30
    %v47 = vunpack.c.l.b16 %v31
    %v48 = vunpack.c.l.b16 %v32
    %v49 = vunpack.c.l.b16 %v33
    %v50 = vunpack.c.l.b16 %v34
    %v51 = vunpack.c.l.b16 %v35
    %v52 = vunpack.c.l.b16 %v36
    %v53 = vpack.c.b16 %v46, %v45
    %v54 = vpack.c.b16 %v48, %v47
    %v55 = vpack.c.b16 %v50, %v49
    %v56 = vpack.c.b16 %v52, %v51
    %v61 = vunpack.c.l.b16 %v25
    %v62 = vunpack.c.h.b16 %v25
    %v63 = vunpack.c.l.b16 %v26
    %v64 = vunpack.c.h.b16 %v26
    %v65 = vunpack.c.l.b16 %v27
    %v66 = vunpack.c.h.b16 %v27
    %v67 = vunpack.c.l.b16 %v28
    %v68 = vunpack.c.h.b16 %v28
    %v69 = vpack.c.b16 %v63, %v61
    %v70 = vpack.c.b16 %v64, %v62
    %v71 = vpack.c.b16 %v67, %v65
    %v72 = vpack.c.b16 %v68, %v66
    %vm77 = vcmask 261120
    %v79 = vsel %vm77, %v53, 0
    %v82 = vsel %vm77, %v54, 0
    %v85 = vsel %vm77, %v55, 0
    %v88 = vsel %vm77, %v56, 0
    %90 = vmatpush.bf16.msra.mxu0 0
    %91 = vmatpush.bf16.msra.mxu0 0
    %92 = vmatpush.bf16.msra.mxu0 0
    %93 = vmatpush.bf16.msra.mxu0 0
    %94 = vmatpush.bf16.msra.mxu0 0
    %95 = vmatpush.bf16.msra.mxu0 0
    %96 = vmatpush.bf16.msra.mxu0 %v71
    %97 = vmatpush.bf16.msra.mxu0 %v69
    %98 = vmatmul.bf16.gmra.mxu0 %v79
    %v99 = vpop.f32.mrf.mxu0
    %v100 = vadd.f32 0.0, %v99
    %v101 = vpop.f32.mrf.mxu0
    %v102 = vadd.f32 0.0, %v101
    %103 = vmatmul.bf16.gmra.mxu0 %v82
    %v104 = vpop.f32.mrf.mxu0
    %v105 = vadd.f32 0.0, %v104
    %v106 = vpop.f32.mrf.mxu0
    %v107 = vadd.f32 0.0, %v106
    %108 = vmatmul.bf16.gmra.mxu0 %v85
    %v109 = vpop.f32.mrf.mxu0
    %v110 = vadd.f32 0.0, %v109
    %v111 = vpop.f32.mrf.mxu0
    %v112 = vadd.f32 0.0, %v111
    %113 = vmatmul.bf16.gmra.mxu0 %v88
    %v114 = vpop.f32.mrf.mxu0
    %v115 = vadd.f32 0.0, %v114
    %v116 = vpop.f32.mrf.mxu0
    %v117 = vadd.f32 0.0, %v116
    %118 = vdwg.mxu0
    %119 = vmatpush.bf16.msra.mxu0 0
    %120 = vmatpush.bf16.msra.mxu0 0
    %121 = vmatpush.bf16.msra.mxu0 0
    %122 = vmatpush.bf16.msra.mxu0 0
    %123 = vmatpush.bf16.msra.mxu0 0
    %124 = vmatpush.bf16.msra.mxu0 0
    %125 = vmatpush.bf16.msra.mxu0 %v72
    %126 = vmatpush.bf16.msra.mxu0 %v70
    %127 = vmatmul.bf16.gmra.mxu0 %v79
    %v128 = vpop.f32.mrf.mxu0
    %v129 = vadd.f32 0.0, %v128
    %v130 = vpop.f32.mrf.mxu0
    %v131 = vadd.f32 0.0, %v130
    %132 = vmatmul.bf16.gmra.mxu0 %v82
    %v133 = vpop.f32.mrf.mxu0
    %v134 = vadd.f32 0.0, %v133
    %v135 = vpop.f32.mrf.mxu0
    %v136 = vadd.f32 0.0, %v135
    %137 = vmatmul.bf16.gmra.mxu0 %v85
    %v138 = vpop.f32.mrf.mxu0
    %v139 = vadd.f32 0.0, %v138
    %v140 = vpop.f32.mrf.mxu0
    %v141 = vadd.f32 0.0, %v140
    %142 = vmatmul.bf16.gmra.mxu0 %v88
    %v143 = vpop.f32.mrf.mxu0
    %v144 = vadd.f32 0.0, %v143
    %v145 = vpop.f32.mrf.mxu0
    %v146 = vadd.f32 0.0, %v145
    %147 = vdwg.mxu0
    %v148 = vld [vmem:[%s1] sm:$0xff]
    %v149 = vld [vmem:[%s1 + $0x8] sm:$0xff]
    %v150 = vld [vmem:[%s1 + $0x10] sm:$0xff]
    %v151 = vld [vmem:[%s1 + $0x18] sm:$0xff]
    %v152 = vld [vmem:[%s1 + $0x20] sm:$0xff]
    %v153 = vld [vmem:[%s1 + $0x28] sm:$0xff]
    %v154 = vld [vmem:[%s1 + $0x30] sm:$0xff]
    %v155 = vld [vmem:[%s1 + $0x38] sm:$0xff]
    %157 = vset.pattern.permute.xlu0 0
    %158 = vperm.xlu0 %157, %v148
    %v159 = vpop.permute.xlu0 %158
    %162 = vset.pattern.permute.xlu0 0
    %163 = vperm.xlu0 %162, %v149
    %v164 = vpop.permute.xlu0 %163
    %167 = vset.pattern.permute.xlu0 0
    %168 = vperm.xlu0 %167, %v150
    %v169 = vpop.permute.xlu0 %168
    %172 = vset.pattern.permute.xlu0 0
    %173 = vperm.xlu0 %172, %v151
    %v174 = vpop.permute.xlu0 %173
    %177 = vset.pattern.permute.xlu0 0
    %178 = vperm.xlu0 %177, %v152
    %v179 = vpop.permute.xlu0 %178
    %182 = vset.pattern.permute.xlu0 0
    %183 = vperm.xlu0 %182, %v153
    %v184 = vpop.permute.xlu0 %183
    %187 = vset.pattern.permute.xlu0 0
    %188 = vperm.xlu0 %187, %v154
    %v189 = vpop.permute.xlu0 %188
    %192 = vset.pattern.permute.xlu0 0
    %193 = vperm.xlu0 %192, %v155
    %v194 = vpop.permute.xlu0 %193
    %v196 = vadd.f32 %v100, %v159
    %v197 = vadd.f32 %v129, %v159
    %v198 = vadd.f32 %v102, %v164
    %v199 = vadd.f32 %v131, %v164
    %v200 = vadd.f32 %v105, %v169
    %v201 = vadd.f32 %v134, %v169
    %v202 = vadd.f32 %v107, %v174
    %v203 = vadd.f32 %v136, %v174
    %v204 = vadd.f32 %v110, %v179
    %v205 = vadd.f32 %v139, %v179
    %v206 = vadd.f32 %v112, %v184
    %v207 = vadd.f32 %v141, %v184
    %v208 = vadd.f32 %v115, %v189
    %v209 = vadd.f32 %v144, %v189
    %v210 = vadd.f32 %v117, %v194
    %v211 = vadd.f32 %v146, %v194
    %v212 = vrot.slane %v196, 4
    %v213 = vmax.f32 %v196, %v212
    %v214 = vrot.slane %v213, 2
    %v215 = vmax.f32 %v213, %v214
    %v216 = vrot.slane %v215, 1
    %v217 = vmax.f32 %v215, %v216
    %v218 = vrot.slane %v197, 4
    %v219 = vmax.f32 %v197, %v218
    %v220 = vrot.slane %v219, 2
    %v221 = vmax.f32 %v219, %v220
    %v222 = vrot.slane %v221, 1
    %v223 = vmax.f32 %v221, %v222
    %v224 = vrot.slane %v198, 4
    %v225 = vmax.f32 %v198, %v224
    %v226 = vrot.slane %v225, 2
    %v227 = vmax.f32 %v225, %v226
    %v228 = vrot.slane %v227, 1
    %v229 = vmax.f32 %v227, %v228
    %v230 = vrot.slane %v199, 4
    %v231 = vmax.f32 %v199, %v230
    %v232 = vrot.slane %v231, 2
    %v233 = vmax.f32 %v231, %v232
    %v234 = vrot.slane %v233, 1
    %v235 = vmax.f32 %v233, %v234
    %v236 = vrot.slane %v200, 4
    %v237 = vmax.f32 %v200, %v236
    %v238 = vrot.slane %v237, 2
    %v239 = vmax.f32 %v237, %v238
    %v240 = vrot.slane %v239, 1
    %v241 = vmax.f32 %v239, %v240
    %v242 = vrot.slane %v201, 4
    %v243 = vmax.f32 %v201, %v242
    %v244 = vrot.slane %v243, 2
    %v245 = vmax.f32 %v243, %v244
    %v246 = vrot.slane %v245, 1
    %v247 = vmax.f32 %v245, %v246
    %v248 = vrot.slane %v202, 4
    %v249 = vmax.f32 %v202, %v248
    %v250 = vrot.slane %v249, 2
    %v251 = vmax.f32 %v249, %v250
    %v252 = vrot.slane %v251, 1
    %v253 = vmax.f32 %v251, %v252
    %v254 = vrot.slane %v203, 4
    %v255 = vmax.f32 %v203, %v254
    %v256 = vrot.slane %v255, 2
    %v257 = vmax.f32 %v255, %v256
    %v258 = vrot.slane %v257, 1
    %v259 = vmax.f32 %v257, %v258
    %v260 = vrot.slane %v204, 4
    %v261 = vmax.f32 %v204, %v260
    %v262 = vrot.slane %v261, 2
    %v263 = vmax.f32 %v261, %v262
    %v264 = vrot.slane %v263, 1
    %v265 = vmax.f32 %v263, %v264
    %v266 = vrot.slane %v205, 4
    %v267 = vmax.f32 %v205, %v266
    %v268 = vrot.slane %v267, 2
    %v269 = vmax.f32 %v267, %v268
    %v270 = vrot.slane %v269, 1
    %v271 = vmax.f32 %v269, %v270
    %v272 = vrot.slane %v206, 4
    %v273 = vmax.f32 %v206, %v272
    %v274 = vrot.slane %v273, 2
    %v275 = vmax.f32 %v273, %v274
    %v276 = vrot.slane %v275, 1
    %v277 = vmax.f32 %v275, %v276
    %v278 = vrot.slane %v207, 4
    %v279 = vmax.f32 %v207, %v278
    %v280 = vrot.slane %v279, 2
    %v281 = vmax.f32 %v279, %v280
    %v282 = vrot.slane %v281, 1
    %v283 = vmax.f32 %v281, %v282
    %v284 = vrot.slane %v208, 4
    %v285 = vmax.f32 %v208, %v284
    %v286 = vrot.slane %v285, 2
    %v287 = vmax.f32 %v285, %v286
    %v288 = vrot.slane %v287, 1
    %v289 = vmax.f32 %v287, %v288
    %v290 = vrot.slane %v209, 4
    %v291 = vmax.f32 %v209, %v290
    %v292 = vrot.slane %v291, 2
    %v293 = vmax.f32 %v291, %v292
    %v294 = vrot.slane %v293, 1
    %v295 = vmax.f32 %v293, %v294
    %v296 = vrot.slane %v210, 4
    %v297 = vmax.f32 %v210, %v296
    %v298 = vrot.slane %v297, 2
    %v299 = vmax.f32 %v297, %v298
    %v300 = vrot.slane %v299, 1
    %v301 = vmax.f32 %v299, %v300
    %v302 = vrot.slane %v211, 4
    %v303 = vmax.f32 %v211, %v302
    %v304 = vrot.slane %v303, 2
    %v305 = vmax.f32 %v303, %v304
    %v306 = vrot.slane %v305, 1
    %v307 = vmax.f32 %v305, %v306
    %v308 = vld [vmem:[%s4] sm:$0x3]
    %v310 = vperm.slane %v308, 0
    %v311 = vperm.slane %v308, 1
    %v314 = vadd.f32 %v217, %v310
    %v315 = vadd.f32 %v223, %v311
    %v316 = vadd.f32 %v229, %v310
    %v317 = vadd.f32 %v235, %v311
    %v318 = vadd.f32 %v241, %v310
    %v319 = vadd.f32 %v247, %v311
    %v320 = vadd.f32 %v253, %v310
    %v321 = vadd.f32 %v259, %v311
    %v322 = vadd.f32 %v265, %v310
    %v323 = vadd.f32 %v271, %v311
    %v324 = vadd.f32 %v277, %v310
    %v325 = vadd.f32 %v283, %v311
    %v326 = vadd.f32 %v289, %v310
    %v327 = vadd.f32 %v295, %v311
    %v328 = vadd.f32 %v301, %v310
    %v329 = vadd.f32 %v307, %v311
    %v330 = vmax.f32 %v314, 0.0
    %v331 = vmax.f32 %v315, 0.0
    %v332 = vmax.f32 %v316, 0.0
    %v333 = vmax.f32 %v317, 0.0
    %v334 = vmax.f32 %v318, 0.0
    %v335 = vmax.f32 %v319, 0.0
    %v336 = vmax.f32 %v320, 0.0
    %v337 = vmax.f32 %v321, 0.0
    %v338 = vmax.f32 %v322, 0.0
    %v339 = vmax.f32 %v323, 0.0
    %v340 = vmax.f32 %v324, 0.0
    %v341 = vmax.f32 %v325, 0.0
    %v342 = vmax.f32 %v326, 0.0
    %v343 = vmax.f32 %v327, 0.0
    %v344 = vmax.f32 %v328, 0.0
    %v345 = vmax.f32 %v329, 0.0
    %v346 = vadd.f32 %v330, 1.0
    %v347 = vlog2.pop %v346
    %v348 = vmul.f32 %v347, 0.6931472
    %v349 = vmul.f32 -0.5, %v330
    %v350 = vadd.f32 %v349, 1.0
    %v351 = vmul.f32 %v350, %v330
    %v352 = vand.u32 2147483647, %v330
    %vm353 = vcmp.lt.f32.partialorder %v352, 0.0004427343
    %v354 = vsel %vm353, %v351, %v348
    %v355 = vadd.f32 %v331, 1.0
    %v356 = vlog2.pop %v355
    %v357 = vmul.f32 %v356, 0.6931472
    %v358 = vmul.f32 -0.5, %v331
    %v359 = vadd.f32 %v358, 1.0
    %v360 = vmul.f32 %v359, %v331
    %v361 = vand.u32 2147483647, %v331
    %vm362 = vcmp.lt.f32.partialorder %v361, 0.0004427343
    %v363 = vsel %vm362, %v360, %v357
    %v364 = vadd.f32 %v332, 1.0
    %v365 = vlog2.pop %v364
    %v366 = vmul.f32 %v365, 0.6931472
    %v367 = vmul.f32 -0.5, %v332
    %v368 = vadd.f32 %v367, 1.0
    %v369 = vmul.f32 %v368, %v332
    %v370 = vand.u32 2147483647, %v332
    %vm371 = vcmp.lt.f32.partialorder %v370, 0.0004427343
    %v372 = vsel %vm371, %v369, %v366
    %v373 = vadd.f32 %v333, 1.0
    %v374 = vlog2.pop %v373
    %v375 = vmul.f32 %v374, 0.6931472
    %v376 = vmul.f32 -0.5, %v333
    %v377 = vadd.f32 %v376, 1.0
    %v378 = vmul.f32 %v377, %v333
    %v379 = vand.u32 2147483647, %v333
    %vm380 = vcmp.lt.f32.partialorder %v379, 0.0004427343
    %v381 = vsel %vm380, %v378, %v375
    %v382 = vadd.f32 %v334, 1.0
    %v383 = vlog2.pop %v382
    %v384 = vmul.f32 %v383, 0.6931472
    %v385 = vmul.f32 -0.5, %v334
    %v386 = vadd.f32 %v385, 1.0
    %v387 = vmul.f32 %v386, %v334
    %v388 = vand.u32 2147483647, %v334
    %vm389 = vcmp.lt.f32.partialorder %v388, 0.0004427343
    %v390 = vsel %vm389, %v387, %v384
    %v391 = vadd.f32 %v335, 1.0
    %v392 = vlog2.pop %v391
    %v393 = vmul.f32 %v392, 0.6931472
    %v394 = vmul.f32 -0.5, %v335
    %v395 = vadd.f32 %v394, 1.0
    %v396 = vmul.f32 %v395, %v335
    %v397 = vand.u32 2147483647, %v335
    %vm398 = vcmp.lt.f32.partialorder %v397, 0.0004427343
    %v399 = vsel %vm398, %v396, %v393
    %v400 = vadd.f32 %v336, 1.0
    %v401 = vlog2.pop %v400
    %v402 = vmul.f32 %v401, 0.6931472
    %v403 = vmul.f32 -0.5, %v336
    %v404 = vadd.f32 %v403, 1.0
    %v405 = vmul.f32 %v404, %v336
    %v406 = vand.u32 2147483647, %v336
    %vm407 = vcmp.lt.f32.partialorder %v406, 0.0004427343
    %v408 = vsel %vm407, %v405, %v402
    %v409 = vadd.f32 %v337, 1.0
    %v410 = vlog2.pop %v409
    %v411 = vmul.f32 %v410, 0.6931472
    %v412 = vmul.f32 -0.5, %v337
    %v413 = vadd.f32 %v412, 1.0
    %v414 = vmul.f32 %v413, %v337
    %v415 = vand.u32 2147483647, %v337
    %vm416 = vcmp.lt.f32.partialorder %v415, 0.0004427343
    %v417 = vsel %vm416, %v414, %v411
    %v418 = vadd.f32 %v338, 1.0
    %v419 = vlog2.pop %v418
    %v420 = vmul.f32 %v419, 0.6931472
    %v421 = vmul.f32 -0.5, %v338
    %v422 = vadd.f32 %v421, 1.0
    %v423 = vmul.f32 %v422, %v338
    %v424 = vand.u32 2147483647, %v338
    %vm425 = vcmp.lt.f32.partialorder %v424, 0.0004427343
    %v426 = vsel %vm425, %v423, %v420
    %v427 = vadd.f32 %v339, 1.0
    %v428 = vlog2.pop %v427
    %v429 = vmul.f32 %v428, 0.6931472
    %v430 = vmul.f32 -0.5, %v339
    %v431 = vadd.f32 %v430, 1.0
    %v432 = vmul.f32 %v431, %v339
    %v433 = vand.u32 2147483647, %v339
    %vm434 = vcmp.lt.f32.partialorder %v433, 0.0004427343
    %v435 = vsel %vm434, %v432, %v429
    %v436 = vadd.f32 %v340, 1.0
    %v437 = vlog2.pop %v436
    %v438 = vmul.f32 %v437, 0.6931472
    %v439 = vmul.f32 -0.5, %v340
    %v440 = vadd.f32 %v439, 1.0
    %v441 = vmul.f32 %v440, %v340
    %v442 = vand.u32 2147483647, %v340
    %vm443 = vcmp.lt.f32.partialorder %v442, 0.0004427343
    %v444 = vsel %vm443, %v441, %v438
    %v445 = vadd.f32 %v341, 1.0
    %v446 = vlog2.pop %v445
    %v447 = vmul.f32 %v446, 0.6931472
    %v448 = vmul.f32 -0.5, %v341
    %v449 = vadd.f32 %v448, 1.0
    %v450 = vmul.f32 %v449, %v341
    %v451 = vand.u32 2147483647, %v341
    %vm452 = vcmp.lt.f32.partialorder %v451, 0.0004427343
    %v453 = vsel %vm452, %v450, %v447
    %v454 = vadd.f32 %v342, 1.0
    %v455 = vlog2.pop %v454
    %v456 = vmul.f32 %v455, 0.6931472
    %v457 = vmul.f32 -0.5, %v342
    %v458 = vadd.f32 %v457, 1.0
    %v459 = vmul.f32 %v458, %v342
    %v460 = vand.u32 2147483647, %v342
    %vm461 = vcmp.lt.f32.partialorder %v460, 0.0004427343
    %v462 = vsel %vm461, %v459, %v456
    %v463 = vadd.f32 %v343, 1.0
    %v464 = vlog2.pop %v463
    %v465 = vmul.f32 %v464, 0.6931472
    %v466 = vmul.f32 -0.5, %v343
    %v467 = vadd.f32 %v466, 1.0
    %v468 = vmul.f32 %v467, %v343
    %v469 = vand.u32 2147483647, %v343
    %vm470 = vcmp.lt.f32.partialorder %v469, 0.0004427343
    %v471 = vsel %vm470, %v468, %v465
    %v472 = vadd.f32 %v344, 1.0
    %v473 = vlog2.pop %v472
    %v474 = vmul.f32 %v473, 0.6931472
    %v475 = vmul.f32 -0.5, %v344
    %v476 = vadd.f32 %v475, 1.0
    %v477 = vmul.f32 %v476, %v344
    %v478 = vand.u32 2147483647, %v344
    %vm479 = vcmp.lt.f32.partialorder %v478, 0.0004427343
    %v480 = vsel %vm479, %v477, %v474
    %v481 = vadd.f32 %v345, 1.0
    %v482 = vlog2.pop %v481
    %v483 = vmul.f32 %v482, 0.6931472
    %v484 = vmul.f32 -0.5, %v345
    %v485 = vadd.f32 %v484, 1.0
    %v486 = vmul.f32 %v485, %v345
    %v487 = vand.u32 2147483647, %v345
    %vm488 = vcmp.lt.f32.partialorder %v487, 0.0004427343
    %v489 = vsel %vm488, %v486, %v483
    %v506 = vrot.slane %v372, 7
    %vm507 = vcmask 1041409
    %v508 = vsel %vm507, %v506, %v354
    %v509 = vrot.slane %v390, 6
    %vm510 = vcmask 1042434
    %v511 = vsel %vm510, %v509, %v508
    %v512 = vrot.slane %v408, 5
    %vm513 = vcmask 1043459
    %v514 = vsel %vm513, %v512, %v511
    %v515 = vrot.slane %v426, 4
    %vm516 = vcmask 1044484
    %v517 = vsel %vm516, %v515, %v514
    %v518 = vrot.slane %v444, 3
    %vm519 = vcmask 1045509
    %v520 = vsel %vm519, %v518, %v517
    %v521 = vrot.slane %v462, 2
    %vm522 = vcmask 1046534
    %v523 = vsel %vm522, %v521, %v520
    %v524 = vrot.slane %v480, 1
    %vm525 = vcmask 1047559
    %v526 = vsel %vm525, %v524, %v523
    %v527 = vrot.slane %v381, 7
    %v528 = vsel %vm507, %v527, %v363
    %v529 = vrot.slane %v399, 6
    %v530 = vsel %vm510, %v529, %v528
    %v531 = vrot.slane %v417, 5
    %v532 = vsel %vm513, %v531, %v530
    %v533 = vrot.slane %v435, 4
    %v534 = vsel %vm516, %v533, %v532
    %v535 = vrot.slane %v453, 3
    %v536 = vsel %vm519, %v535, %v534
    %v537 = vrot.slane %v471, 2
    %v538 = vsel %vm522, %v537, %v536
    %v539 = vrot.slane %v489, 1
    %v540 = vsel %vm525, %v539, %v538
    %543 = vst [vmem:[#allocation2] sm:$0xff] %v526
    %544 = vst [vmem:[#allocation2 + $0x8] sm:$0xff] %v540
    %p545 = scmp.eq.s32.totalorder 0, 0
    // Predicated region
    $region22: #{tpu_custom_call.1} parent=1 // pred_check
      %p546 = pneg %p545
    $region23: #{tpu_custom_call.1} parent=1 // pred_check_branch
      %548 = sbr.rel (%p546) target = $region25
    $region24: #{tpu_custom_call.1} parent=1 // pred_region
      %v549 = vld [vmem:[%s0] sm:$0xf]
      %v550 = vld [vmem:[%s0 + $0x4] sm:$0xf]
      %v551 = vld [vmem:[%s0 + $0x8] sm:$0xf]
      %v552 = vld [vmem:[%s0 + $0xc] sm:$0xf]
      %v553 = vld [vmem:[%s0 + $0x10] sm:$0xf]
      %v554 = vld [vmem:[%s0 + $0x14] sm:$0xf]
      %v555 = vld [vmem:[%s0 + $0x18] sm:$0xf]
      %v556 = vld [vmem:[%s0 + $0x1c] sm:$0xf]
      %v557 = vunpack.c.l.bf16 %v549
      %v558 = vunpack.c.l.bf16 %v550
      %v559 = vunpack.c.l.bf16 %v551
      %v560 = vunpack.c.l.bf16 %v552
      %v561 = vunpack.c.l.bf16 %v553
      %v562 = vunpack.c.l.bf16 %v554
      %v563 = vunpack.c.l.bf16 %v555
      %v564 = vunpack.c.l.bf16 %v556
      %v565 = vld [vmem:[%s2] sm:$0xff]
      %v566 = vld [vmem:[%s2 + $0x8] sm:$0xff]
      %v567 = vld [vmem:[%s2 + $0x10] sm:$0xff]
      %v568 = vld [vmem:[%s2 + $0x18] sm:$0xff]
      %v569 = vld [vmem:[%s2 + $0x20] sm:$0xff]
      %v570 = vld [vmem:[%s2 + $0x28] sm:$0xff]
      %v571 = vld [vmem:[%s2 + $0x30] sm:$0xff]
      %v572 = vld [vmem:[%s2 + $0x38] sm:$0xff]
      %574 = vset.pattern.permute.xlu0 0
      %575 = vperm.xlu0 %574, %v565
      %v576 = vpop.permute.xlu0 %575
      %579 = vset.pattern.permute.xlu0 0
      %580 = vperm.xlu0 %579, %v566
      %v581 = vpop.permute.xlu0 %580
      %584 = vset.pattern.permute.xlu0 0
      %585 = vperm.xlu0 %584, %v567
      %v586 = vpop.permute.xlu0 %585
      %589 = vset.pattern.permute.xlu0 0
      %590 = vperm.xlu0 %589, %v568
      %v591 = vpop.permute.xlu0 %590
      %594 = vset.pattern.permute.xlu0 0
      %595 = vperm.xlu0 %594, %v569
      %v596 = vpop.permute.xlu0 %595
      %599 = vset.pattern.permute.xlu0 0
      %600 = vperm.xlu0 %599, %v570
      %v601 = vpop.permute.xlu0 %600
      %604 = vset.pattern.permute.xlu0 0
      %605 = vperm.xlu0 %604, %v571
      %v606 = vpop.permute.xlu0 %605
      %609 = vset.pattern.permute.xlu0 0
      %610 = vperm.xlu0 %609, %v572
      %v611 = vpop.permute.xlu0 %610
      %v613 = vmul.f32 %v557, %v576
      %v614 = vmul.f32 %v558, %v581
      %v615 = vmul.f32 %v559, %v586
      %v616 = vmul.f32 %v560, %v591
      %v617 = vmul.f32 %v561, %v596
      %v618 = vmul.f32 %v562, %v601
      %v619 = vmul.f32 %v563, %v606
      %v620 = vmul.f32 %v564, %v611
      %v621 = vsel %vm77, %v613, 0.0
      %v622 = vrot.slane %v621, 4
      %v623 = vadd.f32 %v621, %v622
      %v624 = vrot.slane %v623, 2
      %v625 = vadd.f32 %v623, %v624
      %v626 = vrot.slane %v625, 1
      %v627 = vadd.f32 %v625, %v626
      %v628 = vsel %vm77, %v614, 0.0
      %v629 = vrot.slane %v628, 4
      %v630 = vadd.f32 %v628, %v629
      %v631 = vrot.slane %v630, 2
      %v632 = vadd.f32 %v630, %v631
      %v633 = vrot.slane %v632, 1
      %v634 = vadd.f32 %v632, %v633
      %v635 = vsel %vm77, %v615, 0.0
      %v636 = vrot.slane %v635, 4
      %v637 = vadd.f32 %v635, %v636
      %v638 = vrot.slane %v637, 2
      %v639 = vadd.f32 %v637, %v638
      %v640 = vrot.slane %v639, 1
      %v641 = vadd.f32 %v639, %v640
      %v642 = vsel %vm77, %v616, 0.0
      %v643 = vrot.slane %v642, 4
      %v644 = vadd.f32 %v642, %v643
      %v645 = vrot.slane %v644, 2
      %v646 = vadd.f32 %v644, %v645
      %v647 = vrot.slane %v646, 1
      %v648 = vadd.f32 %v646, %v647
      %v649 = vsel %vm77, %v617, 0.0
      %v650 = vrot.slane %v649, 4
      %v651 = vadd.f32 %v649, %v650
      %v652 = vrot.slane %v651, 2
      %v653 = vadd.f32 %v651, %v652
      %v654 = vrot.slane %v653, 1
      %v655 = vadd.f32 %v653, %v654
      %v656 = vsel %vm77, %v618, 0.0
      %v657 = vrot.slane %v656, 4
      %v658 = vadd.f32 %v656, %v657
      %v659 = vrot.slane %v658, 2
      %v660 = vadd.f32 %v658, %v659
      %v661 = vrot.slane %v660, 1
      %v662 = vadd.f32 %v660, %v661
      %v663 = vsel %vm77, %v619, 0.0
      %v664 = vrot.slane %v663, 4
      %v665 = vadd.f32 %v663, %v664
      %v666 = vrot.slane %v665, 2
      %v667 = vadd.f32 %v665, %v666
      %v668 = vrot.slane %v667, 1
      %v669 = vadd.f32 %v667, %v668
      %v670 = vsel %vm77, %v620, 0.0
      %v671 = vrot.slane %v670, 4
      %v672 = vadd.f32 %v670, %v671
      %v673 = vrot.slane %v672, 2
      %v674 = vadd.f32 %v672, %v673
      %v675 = vrot.slane %v674, 1
      %v676 = vadd.f32 %v674, %v675
      %v677 = vadd.f32 %v627, 0.0
      %v678 = vadd.f32 %v634, 0.0
      %v679 = vadd.f32 %v641, 0.0
      %v680 = vadd.f32 %v648, 0.0
      %v681 = vadd.f32 %v655, 0.0
      %v682 = vadd.f32 %v662, 0.0
      %v683 = vadd.f32 %v669, 0.0
      %v684 = vadd.f32 %v676, 0.0
      %vm685 = vcmask 7168
      %v686 = vsel %vm685, %v565, 0.0
      %v687 = vrot.slane %v686, 4
      %v688 = vadd.f32 %v686, %v687
      %v689 = vrot.slane %v688, 2
      %v690 = vadd.f32 %v688, %v689
      %v691 = vrot.slane %v690, 1
      %v692 = vadd.f32 %v690, %v691
      %v693 = vsel %vm685, %v566, 0.0
      %v694 = vrot.slane %v693, 4
      %v695 = vadd.f32 %v693, %v694
      %v696 = vrot.slane %v695, 2
      %v697 = vadd.f32 %v695, %v696
      %v698 = vrot.slane %v697, 1
      %v699 = vadd.f32 %v697, %v698
      %v700 = vsel %vm685, %v567, 0.0
      %v701 = vrot.slane %v700, 4
      %v702 = vadd.f32 %v700, %v701
      %v703 = vrot.slane %v702, 2
      %v704 = vadd.f32 %v702, %v703
      %v705 = vrot.slane %v704, 1
      %v706 = vadd.f32 %v704, %v705
      %v707 = vsel %vm685, %v568, 0.0
      %v708 = vrot.slane %v707, 4
      %v709 = vadd.f32 %v707, %v708
      %v710 = vrot.slane %v709, 2
      %v711 = vadd.f32 %v709, %v710
      %v712 = vrot.slane %v711, 1
      %v713 = vadd.f32 %v711, %v712
      %v714 = vsel %vm685, %v569, 0.0
      %v715 = vrot.slane %v714, 4
      %v716 = vadd.f32 %v714, %v715
      %v717 = vrot.slane %v716, 2
      %v718 = vadd.f32 %v716, %v717
      %v719 = vrot.slane %v718, 1
      %v720 = vadd.f32 %v718, %v719
      %v721 = vsel %vm685, %v570, 0.0
      %v722 = vrot.slane %v721, 4
      %v723 = vadd.f32 %v721, %v722
      %v724 = vrot.slane %v723, 2
      %v725 = vadd.f32 %v723, %v724
      %v726 = vrot.slane %v725, 1
      %v727 = vadd.f32 %v725, %v726
      %v728 = vsel %vm685, %v571, 0.0
      %v729 = vrot.slane %v728, 4
      %v730 = vadd.f32 %v728, %v729
      %v731 = vrot.slane %v730, 2
      %v732 = vadd.f32 %v730, %v731
      %v733 = vrot.slane %v732, 1
      %v734 = vadd.f32 %v732, %v733
      %v735 = vsel %vm685, %v572, 0.0
      %v736 = vrot.slane %v735, 4
      %v737 = vadd.f32 %v735, %v736
      %v738 = vrot.slane %v737, 2
      %v739 = vadd.f32 %v737, %v738
      %v740 = vrot.slane %v739, 1
      %v741 = vadd.f32 %v739, %v740
      %v742 = vadd.f32 %v692, 0.0
      %v743 = vadd.f32 %v699, 0.0
      %v744 = vadd.f32 %v706, 0.0
      %v745 = vadd.f32 %v713, 0.0
      %v746 = vadd.f32 %v720, 0.0
      %v747 = vadd.f32 %v727, 0.0
      %v748 = vadd.f32 %v734, 0.0
      %v749 = vadd.f32 %v741, 0.0
      %v750 = vmax.f32 %v742, 1e-09
      %v751 = vmax.f32 %v743, 1e-09
      %v752 = vmax.f32 %v744, 1e-09
      %v753 = vmax.f32 %v745, 1e-09
      %v754 = vmax.f32 %v746, 1e-09
      %v755 = vmax.f32 %v747, 1e-09
      %v756 = vmax.f32 %v748, 1e-09
      %v757 = vmax.f32 %v749, 1e-09
      %759 = vset.pattern.permute.xlu0 0
      %760 = vperm.xlu0 %759, %v750
      %v761 = vpop.permute.xlu0 %760
      %764 = vset.pattern.permute.xlu0 0
      %765 = vperm.xlu0 %764, %v751
      %v766 = vpop.permute.xlu0 %765
      %769 = vset.pattern.permute.xlu0 0
      %770 = vperm.xlu0 %769, %v752
      %v771 = vpop.permute.xlu0 %770
      %774 = vset.pattern.permute.xlu0 0
      %775 = vperm.xlu0 %774, %v753
      %v776 = vpop.permute.xlu0 %775
      %779 = vset.pattern.permute.xlu0 0
      %780 = vperm.xlu0 %779, %v754
      %v781 = vpop.permute.xlu0 %780
      %784 = vset.pattern.permute.xlu0 0
      %785 = vperm.xlu0 %784, %v755
      %v786 = vpop.permute.xlu0 %785
      %789 = vset.pattern.permute.xlu0 0
      %790 = vperm.xlu0 %789, %v756
      %v791 = vpop.permute.xlu0 %790
      %794 = vset.pattern.permute.xlu0 0
      %795 = vperm.xlu0 %794, %v757
      %v796 = vpop.permute.xlu0 %795
      %v798 = vrcp.pop %v761
      %v799 = vmul.f32 %v761, %v798
      %v800 = vsub.f32 1.0, %v799
      %v801 = vmul.f32 %v798, %v800
      %v802 = vadd.f32 %v798, %v801
      %vm803 = vweird.f32 %v761
      %vm804 = vweird.f32 %v798
      %vm805 = vmor %vm803, %vm804
      %v806 = vsel %vm805, %v798, %v802
      %v807 = vand.u32 2147483647, %v761
      %vm808 = vcmp.eq.f32.partialorder %v807, 8.507059e+37
      %v809 = vand.u32 %v761, 2147483648
      %v810 = vor.u32 1.1754944e-38, %v809
      %v811 = vsel %vm808, %v810, %v806
      %v812 = vmul.f32 %v677, %v811
      %v813 = vrcp.pop %v766
      %v814 = vmul.f32 %v766, %v813
      %v815 = vsub.f32 1.0, %v814
      %v816 = vmul.f32 %v813, %v815
      %v817 = vadd.f32 %v813, %v816
      %vm818 = vweird.f32 %v766
      %vm819 = vweird.f32 %v813
      %vm820 = vmor %vm818, %vm819
      %v821 = vsel %vm820, %v813, %v817
      %v822 = vand.u32 2147483647, %v766
      %vm823 = vcmp.eq.f32.partialorder %v822, 8.507059e+37
      %v824 = vand.u32 %v766, 2147483648
      %v825 = vor.u32 1.1754944e-38, %v824
      %v826 = vsel %vm823, %v825, %v821
      %v827 = vmul.f32 %v678, %v826
      %v828 = vrcp.pop %v771
      %v829 = vmul.f32 %v771, %v828
      %v830 = vsub.f32 1.0, %v829
      %v831 = vmul.f32 %v828, %v830
      %v832 = vadd.f32 %v828, %v831
      %vm833 = vweird.f32 %v771
      %vm834 = vweird.f32 %v828
      %vm835 = vmor %vm833, %vm834
      %v836 = vsel %vm835, %v828, %v832
      %v837 = vand.u32 2147483647, %v771
      %vm838 = vcmp.eq.f32.partialorder %v837, 8.507059e+37
      %v839 = vand.u32 %v771, 2147483648
      %v840 = vor.u32 1.1754944e-38, %v839
      %v841 = vsel %vm838, %v840, %v836
      %v842 = vmul.f32 %v679, %v841
      %v843 = vrcp.pop %v776
      %v844 = vmul.f32 %v776, %v843
      %v845 = vsub.f32 1.0, %v844
      %v846 = vmul.f32 %v843, %v845
      %v847 = vadd.f32 %v843, %v846
      %vm848 = vweird.f32 %v776
      %vm849 = vweird.f32 %v843
      %vm850 = vmor %vm848, %vm849
      %v851 = vsel %vm850, %v843, %v847
      %v852 = vand.u32 2147483647, %v776
      %vm853 = vcmp.eq.f32.partialorder %v852, 8.507059e+37
      %v854 = vand.u32 %v776, 2147483648
      %v855 = vor.u32 1.1754944e-38, %v854
      %v856 = vsel %vm853, %v855, %v851
      %v857 = vmul.f32 %v680, %v856
      %v858 = vrcp.pop %v781
      %v859 = vmul.f32 %v781, %v858
      %v860 = vsub.f32 1.0, %v859
      %v861 = vmul.f32 %v858, %v860
      %v862 = vadd.f32 %v858, %v861
      %vm863 = vweird.f32 %v781
      %vm864 = vweird.f32 %v858
      %vm865 = vmor %vm863, %vm864
      %v866 = vsel %vm865, %v858, %v862
      %v867 = vand.u32 2147483647, %v781
      %vm868 = vcmp.eq.f32.partialorder %v867, 8.507059e+37
      %v869 = vand.u32 %v781, 2147483648
      %v870 = vor.u32 1.1754944e-38, %v869
      %v871 = vsel %vm868, %v870, %v866
      %v872 = vmul.f32 %v681, %v871
      %v873 = vrcp.pop %v786
      %v874 = vmul.f32 %v786, %v873
      %v875 = vsub.f32 1.0, %v874
      %v876 = vmul.f32 %v873, %v875
      %v877 = vadd.f32 %v873, %v876
      %vm878 = vweird.f32 %v786
      %vm879 = vweird.f32 %v873
      %vm880 = vmor %vm878, %vm879
      %v881 = vsel %vm880, %v873, %v877
      %v882 = vand.u32 2147483647, %v786
      %vm883 = vcmp.eq.f32.partialorder %v882, 8.507059e+37
      %v884 = vand.u32 %v786, 2147483648
      %v885 = vor.u32 1.1754944e-38, %v884
      %v886 = vsel %vm883, %v885, %v881
      %v887 = vmul.f32 %v682, %v886
      %v888 = vrcp.pop %v791
      %v889 = vmul.f32 %v791, %v888
      %v890 = vsub.f32 1.0, %v889
      %v891 = vmul.f32 %v888, %v890
      %v892 = vadd.f32 %v888, %v891
      %vm893 = vweird.f32 %v791
      %vm894 = vweird.f32 %v888
      %vm895 = vmor %vm893, %vm894
      %v896 = vsel %vm895, %v888, %v892
      %v897 = vand.u32 2147483647, %v791
      %vm898 = vcmp.eq.f32.partialorder %v897, 8.507059e+37
      %v899 = vand.u32 %v791, 2147483648
      %v900 = vor.u32 1.1754944e-38, %v899
      %v901 = vsel %vm898, %v900, %v896
      %v902 = vmul.f32 %v683, %v901
      %v903 = vrcp.pop %v796
      %v904 = vmul.f32 %v796, %v903
      %v905 = vsub.f32 1.0, %v904
      %v906 = vmul.f32 %v903, %v905
      %v907 = vadd.f32 %v903, %v906
      %vm908 = vweird.f32 %v796
      %vm909 = vweird.f32 %v903
      %vm910 = vmor %vm908, %vm909
      %v911 = vsel %vm910, %v903, %v907
      %v912 = vand.u32 2147483647, %v796
      %vm913 = vcmp.eq.f32.partialorder %v912, 8.507059e+37
      %v914 = vand.u32 %v796, 2147483648
      %v915 = vor.u32 1.1754944e-38, %v914
      %v916 = vsel %vm913, %v915, %v911
      %v917 = vmul.f32 %v684, %v916
      %v926 = vsel %vm507, %v827, %v812
      %v927 = vsel %vm510, %v842, %v926
      %v928 = vsel %vm513, %v857, %v927
      %v929 = vsel %vm516, %v872, %v928
      %v930 = vsel %vm519, %v887, %v929
      %v931 = vsel %vm522, %v902, %v930
      %v932 = vsel %vm525, %v917, %v931
      %934 = vst.msk [vmem:[#allocation4] sm:$0xff] %vm77, %v932
    $region25: #{tpu_custom_call.1} parent=1 // pred_fallthru
      _
    // Predicated region
    $region26: #{tpu_custom_call.1} parent=1 // pred_check
      _
    $region27: #{tpu_custom_call.1} parent=1 // pred_check_branch
      %936 = sbr.rel (0) target = $region29
    $region28: #{tpu_custom_call.1} parent=1 // pred_region
      %938 = vsyncadd [#allocation3], 0
      %s940 = sshll.u32 [#allocation2], 4
      %s941 = int_to_ptr.vmem [resolvable:$true] %s940
      %s942 = sshll.u32 %s5, 4
      %s943 = int_to_ptr.hbm [resolvable:$true] %s942
      %945 = dma.vmem_to_hbm [thread:$0]  %s941, 256, %s943, [#allocation3]
    $region29: #{tpu_custom_call.1} parent=1 // pred_fallthru
      _
    // Predicated region
    $region30: #{tpu_custom_call.1} parent=1 // pred_check
      _
    $region31: #{tpu_custom_call.1} parent=1 // pred_check_branch
      %947 = sbr.rel (0) target = $region33
    $region32: #{tpu_custom_call.1} parent=1 // pred_region
      %949 = vsyncadd [#allocation5], 0
      %s951 = sshll.u32 [#allocation4], 4
      %s952 = int_to_ptr.vmem [resolvable:$true] %s951
      %s953 = sshll.u32 %s6, 4
      %s954 = int_to_ptr.hbm [resolvable:$true] %s953
      %956 = dma.vmem_to_hbm [thread:$0]  %s952, 128, %s954, [#allocation5]
    $region33: #{tpu_custom_call.1} parent=1 // pred_fallthru
      _
    // Predicated region
    $region34: #{tpu_custom_call.1} parent=1 // pred_check
      _
    $region35: #{tpu_custom_call.1} parent=1 // pred_check_branch
      %958 = sbr.rel (0) target = $region37
    $region36: #{tpu_custom_call.1} parent=1 // pred_region
      %960 = dma.done [#allocation3], 256
    $region37: #{tpu_custom_call.1} parent=1 // pred_fallthru
      _
    // Predicated region
    $region38: #{tpu_custom_call.1} parent=1 // pred_check
      _
    $region39: #{tpu_custom_call.1} parent=1 // pred_check_branch
      %962 = sbr.rel (0) target = $region41
    $region40: #{tpu_custom_call.1} parent=1 // pred_region
      %964 = dma.done [#allocation5], 128
    $region41: #{tpu_custom_call.1} parent=1 // pred_fallthru
      _
    %965 = vsyncpa [#allocation3], 1
    %966 = vsyncpa [#allocation5], 1

</llo_original>
